<compile_context>
chip_gen: v7x
topology: tpu7x:2x2x1
jax: 0.10.0
libtpu: 0.0.40
codegen_flags: <defaults>
</compile_context>

<pallas_src>
import functools

import jax
import jax.numpy as jnp
from jax import lax
from jax.experimental import pallas as pl
from jax.experimental.pallas import tpu as pltpu


_TILE_B_MAX = 4096  # rows per grid step once the gather is vectorized


def _round_up(x, m):
    return (x + m - 1) // m * m


def _choose_tile_b(batch):
    """Batch tile: big enough to amortize per-step overhead, >=2 steps for
    megacore when the batch is large, always a multiple of 8 (sublane rule)."""
    if batch <= 1024:
        return _round_up(batch, 8)
    if batch <= 2 * _TILE_B_MAX:
        return _round_up(pl.cdiv(batch, 2), 8)
    return _TILE_B_MAX


def _fused_embed_kernel(vocab_sizes, vocab_offsets, idx_ref, table_ref, out_ref):
    """Fused multi-column embedding gather via block-diagonal one-hot matmul.

    idx_ref:   VMEM (tile_b, num_cols) int32 lookup indices.
    table_ref: VMEM (V_total, E_total) f32 block-diagonal embedding table
               (table c occupies rows [voff_c, voff_c+V_c) and columns
               [eoff_c, eoff_c+E_c); everything else is zero).
    out_ref:   VMEM (tile_b, E_total) f32 concatenated output tile.
    """
    tile_b = out_ref.shape[0]
    v_total = table_ref.shape[0]

    idx = idx_ref[...]  # (tile_b, num_cols) int32, one vreg-wide load
    iota = lax.broadcasted_iota(jnp.int32, (tile_b, v_total), 1)

    # Multi-hot selector: one 1.0 per column block per row. Columns never
    # overlap in the block-diagonal table, so the single matmul below yields
    # the exact concatenation of per-column gathers.
    onehot = jnp.zeros((tile_b, v_total), jnp.float32)
    for c, (vocab, voff) in enumerate(zip(vocab_sizes, vocab_offsets)):
        # Clamp keeps out-of-range (and batch-padding) indices inside this
        # column's block; PyTorch nn.Embedding would raise instead.
        col = jnp.clip(idx[:, c:c + 1], 0, vocab - 1) + voff  # (tile_b, 1)
        onehot = onehot + (iota == col).astype(jnp.float32)

    # One lane-dense store of the whole concatenated tile (no per-row vst.msk).
    out_ref[...] = jnp.dot(
        onehot,
        table_ref[...],
        preferred_element_type=jnp.float32,
        precision=lax.Precision.HIGHEST,  # exact 1.0 * f32 selection
    )


def fused_embedding_lookup(cat_tensor, block_table, vocab_sizes):
    """cat_tensor: (B, num_cols) int; block_table: (V_total, E_total) f32."""
    B, num_cols = cat_tensor.shape
    v_total, e_total = block_table.shape
    assert num_cols == len(vocab_sizes)
    assert v_total == sum(vocab_sizes)

    vocab_offsets = []
    voff = 0
    for v in vocab_sizes:
        vocab_offsets.append(voff)
        voff += v

    tile_b = _choose_tile_b(B)
    b_pad = _round_up(B, tile_b)
    grid = (b_pad // tile_b,)

    idx = cat_tensor.astype(jnp.int32)
    if b_pad != B:
        # Pad with index 0 (valid after in-kernel clamp); sliced off below.
        idx = jnp.pad(idx, ((0, b_pad - B), (0, 0)))

    kernel = functools.partial(
        _fused_embed_kernel, tuple(int(v) for v in vocab_sizes), tuple(vocab_offsets)
    )

    # VMEM budget (lane/sublane padded), double buffers for the pipelined
    # operands plus one-hot temporaries; clamped to v7x's 64 MiB physical VMEM.
    lanes = 128
    idx_bytes = 2 * tile_b * _round_up(num_cols, lanes) * 4
    out_bytes = 2 * tile_b * _round_up(e_total, lanes) * 4
    tbl_bytes = 2 * _round_up(v_total, 8) * _round_up(e_total, lanes) * 4
    tmp_bytes = 4 * tile_b * _round_up(v_total, lanes) * 4
    vmem_limit = int(
        min(max(idx_bytes + out_bytes + tbl_bytes + tmp_bytes + (4 << 20), 32 << 20),
            64 << 20)
    )

    out = pl.pallas_call(
        kernel,
        out_shape=jax.ShapeDtypeStruct((b_pad, e_total), jnp.float32),
        grid_spec=pltpu.PrefetchScalarGridSpec(
            num_scalar_prefetch=0,
            grid=grid,
            in_specs=[
                # Indices: VMEM-tiled per batch block (enables vreg-wide compare).
                pl.BlockSpec((tile_b, num_cols), lambda b: (b, 0)),
                # Block-diagonal table: whole-array block, constant index ->
                # resident across batch tiles (DMA'd once).
                pl.BlockSpec((v_total, e_total), lambda b: (0, 0)),
            ],
            out_specs=pl.BlockSpec((tile_b, e_total), lambda b: (b, 0)),
        ),
        compiler_params=pltpu.CompilerParams(
            dimension_semantics=("parallel",),
            vmem_limit_bytes=vmem_limit,
        ),
        cost_estimate=pl.CostEstimate(
            flops=2 * b_pad * v_total * e_total,
            transcendentals=0,
            # Table charged once per call (constant-index block is DMA'd once).
            bytes_accessed=(
                b_pad * num_cols * 4 + v_total * e_total * 4 + b_pad * e_total * 4
            ),
        ),
    )(idx, block_table)

    return out[:B] if b_pad != B else out


class EmbeddingLayerPallas:
    """JAX/Pallas port of the PyTorch EmbeddingLayer (forward pass)."""

    def __init__(self, cat_code_dict, cat_cols, key):
        self.cat_cols = list(cat_cols)
        self.vocab_sizes = []
        self.emb_dims = []
        self.tables = []
        for col in self.cat_cols:
            vocab = len(cat_code_dict[col])
            emb_dim = min(50, vocab // 2)
            assert emb_dim > 0, f"column {col!r}: vocab={vocab} gives emb_dim=0"
            key, sub = jax.random.split(key)
            # nn.Embedding default init: N(0, 1). Kept f32 so the one-hot MXU
            # path is bit-compatible with the f32 PyTorch reference
            # (bf16 tables would halve bytes but round the embeddings).
            self.tables.append(
                jax.random.normal(sub, (vocab, emb_dim), dtype=jnp.float32)
            )
            self.vocab_sizes.append(vocab)
            self.emb_dims.append(emb_dim)

        # Precompute the block-diagonal table once (construction-time, not per call).
        v_total = sum(self.vocab_sizes)
        e_total = sum(self.emb_dims)
        block = jnp.zeros((v_total, e_total), jnp.float32)
        voff = eoff = 0
        for t, v, e in zip(self.tables, self.vocab_sizes, self.emb_dims):
            block = block.at[voff:voff + v, eoff:eoff + e].set(t)
            voff += v
            eoff += e
        self.block_table = block

    def __call__(self, cat_tensor):
        return fused_embedding_lookup(cat_tensor, self.block_table, self.vocab_sizes)


if __name__ == "__main__":
    key = jax.random.PRNGKey(0)

    # Synthetic categorical schema (small shapes).
    cat_code_dict = {
        "colA": list(range(12)),  # emb_dim = 6
        "colB": list(range(20)),  # emb_dim = 10
        "colC": list(range(8)),   # emb_dim = 4
    }
    cat_cols = ["colA", "colB", "colC"]

    key, k_model, k_data = jax.random.split(key, 3)
    model = EmbeddingLayerPallas(cat_code_dict, cat_cols, k_model)

    batch = 8
    idx_keys = jax.random.split(k_data, len(cat_cols))
    cols = [
        jax.random.randint(
            idx_keys[i], (batch,), 0, len(cat_code_dict[c]), dtype=jnp.int32
        )
        for i, c in enumerate(cat_cols)
    ]
    cat_tensor = jnp.stack(cols, axis=1)  # [B, num_cols] int32

    out = model(cat_tensor)
    out = jax.block_until_ready(out)

    # Pure-JAX reference: per-column gather + concat.
    ref = jnp.concatenate(
        [
            jnp.take(model.tables[i], cat_tensor[:, i], axis=0)
            for i in range(len(cat_cols))
        ],
        axis=1,
    )
    assert out.shape == (batch, 6 + 10 + 4), out.shape
    assert jnp.allclose(out, ref, rtol=1e-5, atol=1e-5), "mismatch vs reference"

    print("KERNEL_OK")
</pallas_src>

<mosaic_0001>
module attributes {stable_mosaic.version = 11 : i64} {
  func.func @_fused_embed_kernel(%arg0: i32, %arg1: memref<8x3xi32, #tpu.memory_space<vmem>>, %arg2: memref<40x20xf32, #tpu.memory_space<vmem>>, %arg3: memref<8x20xf32, #tpu.memory_space<vmem>>) attributes {dimension_semantics = [#tpu.dimension_semantics<parallel>], iteration_bounds = array<i64: 1>, scalar_prefetch = 0 : i64, scratch_operands = 0 : i64, tpu.core_type = #tpu.core_type<tc>, window_params = [{transform_indices = @transform_0, window_bounds = array<i64: 8, 3>}, {pipeline_mode = #tpu.pipeline_mode<synchronous>, transform_indices = @transform_1, window_bounds = array<i64: 40, 20>}, {transform_indices = @transform_2, window_bounds = array<i64: 8, 20>}]} {
    %c0 = arith.constant 0 : index
    %c0_0 = arith.constant 0 : index
    %0 = vector.load %arg1[%c0, %c0_0] : memref<8x3xi32, #tpu.memory_space<vmem>>, vector<8x3xi32>
    %1 = tpu.iota {dimensions = array<i32: 1>} : vector<8x40xi32>
    %cst = arith.constant 0.000000e+00 : f32
    %2 = vector.broadcast %cst : f32 to vector<8x40xf32>
    %3 = vector.extract_strided_slice %0 {offsets = [0, 0], sizes = [8, 1], strides = [1, 1]} : vector<8x3xi32> to vector<8x1xi32>
    %c0_i32 = arith.constant 0 : i32
    %c11_i32 = arith.constant 11 : i32
    %4 = vector.broadcast %c0_i32 : i32 to vector<8x1xi32>
    %5 = arith.maxsi %4, %3 : vector<8x1xi32>
    %6 = vector.broadcast %c11_i32 : i32 to vector<8x1xi32>
    %7 = arith.minsi %6, %5 : vector<8x1xi32>
    %c0_i32_1 = arith.constant 0 : i32
    %8 = vector.broadcast %c0_i32_1 : i32 to vector<8x1xi32>
    %9 = arith.addi %7, %8 : vector<8x1xi32>
    %10 = vector.broadcast %9 : vector<8x1xi32> to vector<8x40xi32>
    %11 = arith.cmpi eq, %1, %10 : vector<8x40xi32>
    %12 = arith.extui %11 : vector<8x40xi1> to vector<8x40xi32>
    %13 = arith.sitofp %12 : vector<8x40xi32> to vector<8x40xf32>
    %14 = arith.addf %2, %13 : vector<8x40xf32>
    %15 = vector.extract_strided_slice %0 {offsets = [0, 1], sizes = [8, 1], strides = [1, 1]} : vector<8x3xi32> to vector<8x1xi32>
    %c0_i32_2 = arith.constant 0 : i32
    %c19_i32 = arith.constant 19 : i32
    %16 = vector.broadcast %c0_i32_2 : i32 to vector<8x1xi32>
    %17 = arith.maxsi %16, %15 : vector<8x1xi32>
    %18 = vector.broadcast %c19_i32 : i32 to vector<8x1xi32>
    %19 = arith.minsi %18, %17 : vector<8x1xi32>
    %c12_i32 = arith.constant 12 : i32
    %20 = vector.broadcast %c12_i32 : i32 to vector<8x1xi32>
    %21 = arith.addi %19, %20 : vector<8x1xi32>
    %22 = vector.broadcast %21 : vector<8x1xi32> to vector<8x40xi32>
    %23 = arith.cmpi eq, %1, %22 : vector<8x40xi32>
    %24 = arith.extui %23 : vector<8x40xi1> to vector<8x40xi32>
    %25 = arith.sitofp %24 : vector<8x40xi32> to vector<8x40xf32>
    %26 = arith.addf %14, %25 : vector<8x40xf32>
    %27 = vector.extract_strided_slice %0 {offsets = [0, 2], sizes = [8, 1], strides = [1, 1]} : vector<8x3xi32> to vector<8x1xi32>
    %c0_i32_3 = arith.constant 0 : i32
    %c7_i32 = arith.constant 7 : i32
    %28 = vector.broadcast %c0_i32_3 : i32 to vector<8x1xi32>
    %29 = arith.maxsi %28, %27 : vector<8x1xi32>
    %30 = vector.broadcast %c7_i32 : i32 to vector<8x1xi32>
    %31 = arith.minsi %30, %29 : vector<8x1xi32>
    %c32_i32 = arith.constant 32 : i32
    %32 = vector.broadcast %c32_i32 : i32 to vector<8x1xi32>
    %33 = arith.addi %31, %32 : vector<8x1xi32>
    %34 = vector.broadcast %33 : vector<8x1xi32> to vector<8x40xi32>
    %35 = arith.cmpi eq, %1, %34 : vector<8x40xi32>
    %36 = arith.extui %35 : vector<8x40xi1> to vector<8x40xi32>
    %37 = arith.sitofp %36 : vector<8x40xi32> to vector<8x40xf32>
    %38 = arith.addf %26, %37 : vector<8x40xf32>
    %c0_4 = arith.constant 0 : index
    %c0_5 = arith.constant 0 : index
    %39 = vector.load %arg2[%c0_4, %c0_5] : memref<40x20xf32, #tpu.memory_space<vmem>>, vector<40x20xf32>
    %cst_6 = arith.constant dense<0.000000e+00> : vector<8x20xf32>
    %40 = tpu.matmul %38, %39, %cst_6 {dimension_numbers = #tpu.dot_dimension_numbers<[1], [0], [0], [1], [0, 0, 1, 1], [], []>, precision = #tpu.contract_precision<fp32>} : vector<8x40xf32>, vector<40x20xf32>, vector<8x20xf32> -> vector<8x20xf32>
    %c0_7 = arith.constant 0 : index
    %c0_8 = arith.constant 0 : index
    %41 = vector.load %arg3[%c0_7, %c0_8] : memref<8x20xf32, #tpu.memory_space<vmem>>, vector<8x20xf32>
    tpu.vector_store %arg3[%c0_7, %c0_8], %40 {strides = array<i32>} : memref<8x20xf32, #tpu.memory_space<vmem>>, vector<8x20xf32>,
    return
  }
  func.func @transform_0(%arg0: i32) -> (i32, i32) {
    %c0_i32 = arith.constant 0 : i32
    %c0_i32_0 = arith.constant 0 : i32
    return %arg0, %c0_i32 : i32, i32
  }
  func.func @transform_1(%arg0: i32) -> (i32, i32) {
    %c0_i32 = arith.constant 0 : i32
    %c0_i32_0 = arith.constant 0 : i32
    %c0_i32_1 = arith.constant 0 : i32
    return %c0_i32, %c0_i32_0 : i32, i32
  }
  func.func @transform_2(%arg0: i32) -> (i32, i32) {
    %c0_i32 = arith.constant 0 : i32
    %c0_i32_0 = arith.constant 0 : i32
    return %arg0, %c0_i32 : i32, i32
  }
}

</mosaic_0001>

<llo_original>
// kernel: tpu_custom_call.1
$region0: #{tpu_custom_call.1}
  #allocation0 [shape = 'u32[]', space=smem, size = 0x4, offset = 0x4, fixed_abs, tag = 'smem constant byte address 0x4 - core index']
  #allocation1 [shape = 'u32[144,128]{1,0:T(1,128)}', space=vmem, size = 0x12000, scoped, tag = 'internal scratch']
  %s0 = inlined_call_operand.vmem [shape: s32[8,3], index: 0, kind: input, shape index: {}]
  %s1 = inlined_call_operand.vmem [shape: f32[40,20], index: 1, kind: input, shape index: {}]
  %s2 = inlined_call_operand.hbm [shape: f32[8,20], index: 2, kind: output, shape index: {}]
  %s3 = sld [smem:[#allocation0]]
  $region18: #{tpu_custom_call.1} parent=0
    _
  %s5 = ssub.s32 1, %s3
  %s6 = scalar_select 0, %s5, %s3
  $region1: #{tpu_custom_call.1} parent=0
    #allocation2 [shape = 'u8[4096]{0}', space=vmem, size = 0x1000, scoped, tag = 'output window, operand 0, single buffered']
    #allocation3 [shape = 's32[1]{0}', space=sflag, size = 0x4, scoped, tag = 'scoped memory for tpu_custom_call.1']
    %7 = vsyncpa [#allocation3], 0
    // Predicated region
    $region2: #{tpu_custom_call.1} parent=1 // pred_check
      _
    $region3: #{tpu_custom_call.1} parent=1 // pred_check_branch
      %9 = sbr.rel (0) target = $region5
    $region4: #{tpu_custom_call.1} parent=1 // pred_region
      _
    $region5: #{tpu_custom_call.1} parent=1 // pred_fallthru
      _
    // Predicated region
    $region6: #{tpu_custom_call.1} parent=1 // pred_check
      _
    $region7: #{tpu_custom_call.1} parent=1 // pred_check_branch
      %11 = sbr.rel (0) target = $region9
    $region8: #{tpu_custom_call.1} parent=1 // pred_region
      _
    $region9: #{tpu_custom_call.1} parent=1 // pred_fallthru
      _
    %v12 = vld [vmem:[%s0] sm:$0xff]
    %v13 = vlaneseq
    %v14 = vand.u32 %v13, 127
    %vm15 = vcmp.gt.s32.totalorder %v12, 0
    %v16 = vsel %vm15, %v12, 0
    %vm17 = vcmp.lt.s32.totalorder %v16, 11
    %v18 = vsel %vm17, %v16, 11
    %19 = vset.pattern.permute.xlu0 0
    %20 = vperm.xlu0 %19, %v18
    %v21 = vpop.permute.xlu0 %20
    %vm22 = vcmp.eq.s32.totalorder %v14, %v21
    %v23 = vsel %vm22, 1, 0
    %v24 = vcvt.s32.f32 %v23
    %v25 = vadd.f32 %v24, 0.0
    %vm26 = vcmp.lt.s32.totalorder %v16, 19
    %v27 = vsel %vm26, %v16, 19
    %v28 = vadd.s32 %v27, 12
    %29 = vset.pattern.permute.xlu0 1
    %30 = vperm.xlu0 %29, %v28
    %v31 = vpop.permute.xlu0 %30
    %vm32 = vcmp.eq.s32.totalorder %v14, %v31
    %v33 = vsel %vm32, 1, 0
    %v34 = vcvt.s32.f32 %v33
    %v35 = vadd.f32 %v25, %v34
    %vm36 = vcmp.lt.s32.totalorder %v16, 7
    %v37 = vsel %vm36, %v16, 7
    %v38 = vadd.s32 %v37, 32
    %39 = vset.pattern.permute.xlu0 2
    %40 = vperm.xlu0 %39, %v38
    %v41 = vpop.permute.xlu0 %40
    %vm42 = vcmp.eq.s32.totalorder %v14, %v41
    %v43 = vsel %vm42, 1, 0
    %v44 = vcvt.s32.f32 %v43
    %v45 = vadd.f32 %v35, %v44
    %v46 = vld [vmem:[%s1] sm:$0xff]
    %v47 = vld [vmem:[%s1 + $0x8] sm:$0xff]
    %v48 = vld [vmem:[%s1 + $0x10] sm:$0xff]
    %v49 = vld [vmem:[%s1 + $0x18] sm:$0xff]
    %v50 = vld [vmem:[%s1 + $0x20] sm:$0xff]
    %vm51 = vcmask 326656
    %v53 = vsel %vm51, %v45, 0
    %55 = vmatprep.subr.mxu0 0.0
    %v56 = vand.u32 %v46, 4294901760
    %57 = vmatpush1.msra.mxu0 %v56
    %58 = vmatprep.subr.mxu0 0.0
    %v59 = vand.u32 %v47, 4294901760
    %60 = vmatpush1.msra.mxu0 %v59
    %61 = vmatprep.subr.mxu0 0.0
    %v62 = vand.u32 %v48, 4294901760
    %63 = vmatpush1.msra.mxu0 %v62
    %64 = vmatprep.subr.mxu0 0.0
    %v65 = vand.u32 %v49, 4294901760
    %66 = vmatpush1.msra.mxu0 %v65
    %67 = vmatprep.subr.mxu0 0.0
    %v68 = vand.u32 %v50, 4294901760
    %69 = vmatpush1.msra.mxu0 %v68
    %70 = vmatprep.subr.mxu0 0.0
    %71 = vmatpush1.msra.mxu0 0.0
    %72 = vmatprep.subr.mxu0 0.0
    %73 = vmatpush1.msra.mxu0 0.0
    %74 = vmatprep.subr.mxu0 0.0
    %75 = vmatpush1.msra.mxu0 0.0
    %76 = vmatprep.subr.mxu0 0.0
    %77 = vmatpush1.msra.mxu0 0.0
    %78 = vmatprep.subr.mxu0 0.0
    %79 = vmatpush1.msra.mxu0 0.0
    %80 = vmatprep.subr.mxu0 0.0
    %81 = vmatpush1.msra.mxu0 0.0
    %82 = vmatprep.subr.mxu0 0.0
    %83 = vmatpush1.msra.mxu0 0.0
    %84 = vmatprep.subr.mxu0 0.0
    %85 = vmatpush1.msra.mxu0 0.0
    %86 = vmatprep.subr.mxu0 0.0
    %87 = vmatpush1.msra.mxu0 0.0
    %88 = vmatprep.subr.mxu0 0.0
    %89 = vmatpush1.msra.mxu0 0.0
    %90 = vmatprep.subr.mxu0 0.0
    %91 = vmatpush1.msra.mxu0 0.0
    %92 = vmatprep.subr.mxu0 0.0
    %93 = vmatpush1.msra.mxu0 0.0
    %94 = vmatprep.subr.mxu0 0.0
    %95 = vmatpush1.msra.mxu0 0.0
    %96 = vmatprep.subr.mxu0 0.0
    %97 = vmatpush1.msra.mxu0 0.0
    %98 = vmatprep.subr.mxu0 0.0
    %99 = vmatpush1.msra.mxu0 0.0
    %100 = vmatprep.subr.mxu0 0.0
    %101 = vmatpush1.msra.mxu0 0.0
    %102 = vmatprep.subr.mxu0 0.0
    %103 = vmatpush1.msra.mxu0 0.0
    %104 = vmatprep.subr.mxu0 0.0
    %105 = vmatpush1.msra.mxu0 0.0
    %106 = vmatprep.subr.mxu0 0.0
    %107 = vmatpush1.msra.mxu0 0.0
    %108 = vmatprep.subr.mxu0 0.0
    %109 = vmatpush1.msra.mxu0 0.0
    %110 = vmatprep.subr.mxu0 0.0
    %111 = vmatpush1.msra.mxu0 0.0
    %112 = vmatprep.subr.mxu0 0.0
    %113 = vmatpush1.msra.mxu0 0.0
    %114 = vmatprep.subr.mxu0 0.0
    %115 = vmatpush1.msra.mxu0 0.0
    %116 = vmatprep.subr.mxu0 0.0
    %117 = vmatpush1.msra.mxu0 0.0
    %118 = vmatprep.subr.mxu0 0.0
    %119 = vmatpush1.msra.mxu0 0.0
    %120 = vmatprep.subr.mxu0 0.0
    %121 = vmatpush1.msra.mxu0 0.0
    %122 = vmatprep.subr.mxu0 0.0
    %123 = vmatpush1.msra.mxu0 0.0
    %124 = vmatprep.mubr.f32.mxu0 0.0
    %v125 = vand.u32 %v53, 4294901760
    %v126 = vsub.f32 %v53, %v125
    %v127 = vand.u32 %v126, 4294901760
    %v128 = vsub.f32 %v126, %v127
    %v129 = vand.u32 %v128, 4294901760
    %130 = vmatmul.mubr.f32.gmra.mrb[0].mxu0 %v129
    %v131 = vpop.f32.mrb[0].mxu0
    %v132 = vadd.f32 0.0, %v131
    %v133 = vpop.f32.mrb[0].mxu0
    %134 = vdwg.mxu0
    %135 = vmatprep.subr.mxu0 0.0
    %v136 = vand.u32 %v46, 4294901760
    %v137 = vsub.f32 %v46, %v136
    %v138 = vand.u32 %v137, 4294901760
    %v139 = vsub.f32 %v137, %v138
    %v140 = vand.u32 %v139, 4294901760
    %141 = vmatpush1.msra.mxu0 %v140
    %142 = vmatprep.subr.mxu0 0.0
    %v143 = vand.u32 %v47, 4294901760
    %v144 = vsub.f32 %v47, %v143
    %v145 = vand.u32 %v144, 4294901760
    %v146 = vsub.f32 %v144, %v145
    %v147 = vand.u32 %v146, 4294901760
    %148 = vmatpush1.msra.mxu0 %v147
    %149 = vmatprep.subr.mxu0 0.0
    %v150 = vand.u32 %v48, 4294901760
    %v151 = vsub.f32 %v48, %v150
    %v152 = vand.u32 %v151, 4294901760
    %v153 = vsub.f32 %v151, %v152
    %v154 = vand.u32 %v153, 4294901760
    %155 = vmatpush1.msra.mxu0 %v154
    %156 = vmatprep.subr.mxu0 0.0
    %v157 = vand.u32 %v49, 4294901760
    %v158 = vsub.f32 %v49, %v157
    %v159 = vand.u32 %v158, 4294901760
    %v160 = vsub.f32 %v158, %v159
    %v161 = vand.u32 %v160, 4294901760
    %162 = vmatpush1.msra.mxu0 %v161
    %163 = vmatprep.subr.mxu0 0.0
    %v164 = vand.u32 %v50, 4294901760
    %v165 = vsub.f32 %v50, %v164
    %v166 = vand.u32 %v165, 4294901760
    %v167 = vsub.f32 %v165, %v166
    %v168 = vand.u32 %v167, 4294901760
    %169 = vmatpush1.msra.mxu0 %v168
    %170 = vmatprep.subr.mxu0 0.0
    %171 = vmatpush1.msra.mxu0 0.0
    %172 = vmatprep.subr.mxu0 0.0
    %173 = vmatpush1.msra.mxu0 0.0
    %174 = vmatprep.subr.mxu0 0.0
    %175 = vmatpush1.msra.mxu0 0.0
    %176 = vmatprep.subr.mxu0 0.0
    %177 = vmatpush1.msra.mxu0 0.0
    %178 = vmatprep.subr.mxu0 0.0
    %179 = vmatpush1.msra.mxu0 0.0
    %180 = vmatprep.subr.mxu0 0.0
    %181 = vmatpush1.msra.mxu0 0.0
    %182 = vmatprep.subr.mxu0 0.0
    %183 = vmatpush1.msra.mxu0 0.0
    %184 = vmatprep.subr.mxu0 0.0
    %185 = vmatpush1.msra.mxu0 0.0
    %186 = vmatprep.subr.mxu0 0.0
    %187 = vmatpush1.msra.mxu0 0.0
    %188 = vmatprep.subr.mxu0 0.0
    %189 = vmatpush1.msra.mxu0 0.0
    %190 = vmatprep.subr.mxu0 0.0
    %191 = vmatpush1.msra.mxu0 0.0
    %192 = vmatprep.subr.mxu0 0.0
    %193 = vmatpush1.msra.mxu0 0.0
    %194 = vmatprep.subr.mxu0 0.0
    %195 = vmatpush1.msra.mxu0 0.0
    %196 = vmatprep.subr.mxu0 0.0
    %197 = vmatpush1.msra.mxu0 0.0
    %198 = vmatprep.subr.mxu0 0.0
    %199 = vmatpush1.msra.mxu0 0.0
    %200 = vmatprep.subr.mxu0 0.0
    %201 = vmatpush1.msra.mxu0 0.0
    %202 = vmatprep.subr.mxu0 0.0
    %203 = vmatpush1.msra.mxu0 0.0
    %204 = vmatprep.subr.mxu0 0.0
    %205 = vmatpush1.msra.mxu0 0.0
    %206 = vmatprep.subr.mxu0 0.0
    %207 = vmatpush1.msra.mxu0 0.0
    %208 = vmatprep.subr.mxu0 0.0
    %209 = vmatpush1.msra.mxu0 0.0
    %210 = vmatprep.subr.mxu0 0.0
    %211 = vmatpush1.msra.mxu0 0.0
    %212 = vmatprep.subr.mxu0 0.0
    %213 = vmatpush1.msra.mxu0 0.0
    %214 = vmatprep.subr.mxu0 0.0
    %215 = vmatpush1.msra.mxu0 0.0
    %216 = vmatprep.subr.mxu0 0.0
    %217 = vmatpush1.msra.mxu0 0.0
    %218 = vmatprep.subr.mxu0 0.0
    %219 = vmatpush1.msra.mxu0 0.0
    %220 = vmatprep.subr.mxu0 0.0
    %221 = vmatpush1.msra.mxu0 0.0
    %222 = vmatprep.subr.mxu0 0.0
    %223 = vmatpush1.msra.mxu0 0.0
    %224 = vmatprep.mubr.f32.mxu0 0.0
    %v225 = vand.u32 %v53, 4294901760
    %226 = vmatmul.mubr.f32.gmra.mrb[0].mxu0 %v225
    %v227 = vpop.f32.mrb[0].mxu0
    %v228 = vadd.f32 %v132, %v227
    %v229 = vpop.f32.mrb[0].mxu0
    %230 = vdwg.mxu0
    %231 = vmatprep.subr.mxu0 0.0
    %v232 = vand.u32 %v46, 4294901760
    %v233 = vsub.f32 %v46, %v232
    %234 = vmatpush1.msra.mxu0 %v233
    %235 = vmatprep.subr.mxu0 0.0
    %v236 = vand.u32 %v47, 4294901760
    %v237 = vsub.f32 %v47, %v236
    %238 = vmatpush1.msra.mxu0 %v237
    %239 = vmatprep.subr.mxu0 0.0
    %v240 = vand.u32 %v48, 4294901760
    %v241 = vsub.f32 %v48, %v240
    %242 = vmatpush1.msra.mxu0 %v241
    %243 = vmatprep.subr.mxu0 0.0
    %v244 = vand.u32 %v49, 4294901760
    %v245 = vsub.f32 %v49, %v244
    %246 = vmatpush1.msra.mxu0 %v245
    %247 = vmatprep.subr.mxu0 0.0
    %v248 = vand.u32 %v50, 4294901760
    %v249 = vsub.f32 %v50, %v248
    %250 = vmatpush1.msra.mxu0 %v249
    %251 = vmatprep.subr.mxu0 0.0
    %252 = vmatpush1.msra.mxu0 0.0
    %253 = vmatprep.subr.mxu0 0.0
    %254 = vmatpush1.msra.mxu0 0.0
    %255 = vmatprep.subr.mxu0 0.0
    %256 = vmatpush1.msra.mxu0 0.0
    %257 = vmatprep.subr.mxu0 0.0
    %258 = vmatpush1.msra.mxu0 0.0
    %259 = vmatprep.subr.mxu0 0.0
    %260 = vmatpush1.msra.mxu0 0.0
    %261 = vmatprep.subr.mxu0 0.0
    %262 = vmatpush1.msra.mxu0 0.0
    %263 = vmatprep.subr.mxu0 0.0
    %264 = vmatpush1.msra.mxu0 0.0
    %265 = vmatprep.subr.mxu0 0.0
    %266 = vmatpush1.msra.mxu0 0.0
    %267 = vmatprep.subr.mxu0 0.0
    %268 = vmatpush1.msra.mxu0 0.0
    %269 = vmatprep.subr.mxu0 0.0
    %270 = vmatpush1.msra.mxu0 0.0
    %271 = vmatprep.subr.mxu0 0.0
    %272 = vmatpush1.msra.mxu0 0.0
    %273 = vmatprep.subr.mxu0 0.0
    %274 = vmatpush1.msra.mxu0 0.0
    %275 = vmatprep.subr.mxu0 0.0
    %276 = vmatpush1.msra.mxu0 0.0
    %277 = vmatprep.subr.mxu0 0.0
    %278 = vmatpush1.msra.mxu0 0.0
    %279 = vmatprep.subr.mxu0 0.0
    %280 = vmatpush1.msra.mxu0 0.0
    %281 = vmatprep.subr.mxu0 0.0
    %282 = vmatpush1.msra.mxu0 0.0
    %283 = vmatprep.subr.mxu0 0.0
    %284 = vmatpush1.msra.mxu0 0.0
    %285 = vmatprep.subr.mxu0 0.0
    %286 = vmatpush1.msra.mxu0 0.0
    %287 = vmatprep.subr.mxu0 0.0
    %288 = vmatpush1.msra.mxu0 0.0
    %289 = vmatprep.subr.mxu0 0.0
    %290 = vmatpush1.msra.mxu0 0.0
    %291 = vmatprep.subr.mxu0 0.0
    %292 = vmatpush1.msra.mxu0 0.0
    %293 = vmatprep.subr.mxu0 0.0
    %294 = vmatpush1.msra.mxu0 0.0
    %295 = vmatprep.subr.mxu0 0.0
    %296 = vmatpush1.msra.mxu0 0.0
    %297 = vmatprep.subr.mxu0 0.0
    %298 = vmatpush1.msra.mxu0 0.0
    %299 = vmatprep.subr.mxu0 0.0
    %300 = vmatpush1.msra.mxu0 0.0
    %301 = vmatprep.subr.mxu0 0.0
    %302 = vmatpush1.msra.mxu0 0.0
    %303 = vmatprep.subr.mxu0 0.0
    %304 = vmatpush1.msra.mxu0 0.0
    %305 = vmatprep.mubr.f32.mxu0 0.0
    %v306 = vand.u32 %v53, 4294901760
    %v307 = vsub.f32 %v53, %v306
    %308 = vmatmul.mubr.f32.gmra.mrb[0].mxu0 %v307
    %v309 = vpop.f32.mrb[0].mxu0
    %v310 = vadd.f32 %v228, %v309
    %v311 = vpop.f32.mrb[0].mxu0
    %312 = vdwg.mxu0
    %313 = vmatprep.subr.mxu0 0.0
    %v314 = vand.u32 %v46, 4294901760
    %315 = vmatpush1.msra.mxu0 %v314
    %316 = vmatprep.subr.mxu0 0.0
    %v317 = vand.u32 %v47, 4294901760
    %318 = vmatpush1.msra.mxu0 %v317
    %319 = vmatprep.subr.mxu0 0.0
    %v320 = vand.u32 %v48, 4294901760
    %321 = vmatpush1.msra.mxu0 %v320
    %322 = vmatprep.subr.mxu0 0.0
    %v323 = vand.u32 %v49, 4294901760
    %324 = vmatpush1.msra.mxu0 %v323
    %325 = vmatprep.subr.mxu0 0.0
    %v326 = vand.u32 %v50, 4294901760
    %327 = vmatpush1.msra.mxu0 %v326
    %328 = vmatprep.subr.mxu0 0.0
    %329 = vmatpush1.msra.mxu0 0.0
    %330 = vmatprep.subr.mxu0 0.0
    %331 = vmatpush1.msra.mxu0 0.0
    %332 = vmatprep.subr.mxu0 0.0
    %333 = vmatpush1.msra.mxu0 0.0
    %334 = vmatprep.subr.mxu0 0.0
    %335 = vmatpush1.msra.mxu0 0.0
    %336 = vmatprep.subr.mxu0 0.0
    %337 = vmatpush1.msra.mxu0 0.0
    %338 = vmatprep.subr.mxu0 0.0
    %339 = vmatpush1.msra.mxu0 0.0
    %340 = vmatprep.subr.mxu0 0.0
    %341 = vmatpush1.msra.mxu0 0.0
    %342 = vmatprep.subr.mxu0 0.0
    %343 = vmatpush1.msra.mxu0 0.0
    %344 = vmatprep.subr.mxu0 0.0
    %345 = vmatpush1.msra.mxu0 0.0
    %346 = vmatprep.subr.mxu0 0.0
    %347 = vmatpush1.msra.mxu0 0.0
    %348 = vmatprep.subr.mxu0 0.0
    %349 = vmatpush1.msra.mxu0 0.0
    %350 = vmatprep.subr.mxu0 0.0
    %351 = vmatpush1.msra.mxu0 0.0
    %352 = vmatprep.subr.mxu0 0.0
    %353 = vmatpush1.msra.mxu0 0.0
    %354 = vmatprep.subr.mxu0 0.0
    %355 = vmatpush1.msra.mxu0 0.0
    %356 = vmatprep.subr.mxu0 0.0
    %357 = vmatpush1.msra.mxu0 0.0
    %358 = vmatprep.subr.mxu0 0.0
    %359 = vmatpush1.msra.mxu0 0.0
    %360 = vmatprep.subr.mxu0 0.0
    %361 = vmatpush1.msra.mxu0 0.0
    %362 = vmatprep.subr.mxu0 0.0
    %363 = vmatpush1.msra.mxu0 0.0
    %364 = vmatprep.subr.mxu0 0.0
    %365 = vmatpush1.msra.mxu0 0.0
    %366 = vmatprep.subr.mxu0 0.0
    %367 = vmatpush1.msra.mxu0 0.0
    %368 = vmatprep.subr.mxu0 0.0
    %369 = vmatpush1.msra.mxu0 0.0
    %370 = vmatprep.subr.mxu0 0.0
    %371 = vmatpush1.msra.mxu0 0.0
    %372 = vmatprep.subr.mxu0 0.0
    %373 = vmatpush1.msra.mxu0 0.0
    %374 = vmatprep.subr.mxu0 0.0
    %375 = vmatpush1.msra.mxu0 0.0
    %376 = vmatprep.subr.mxu0 0.0
    %377 = vmatpush1.msra.mxu0 0.0
    %378 = vmatprep.subr.mxu0 0.0
    %379 = vmatpush1.msra.mxu0 0.0
    %380 = vmatprep.subr.mxu0 0.0
    %381 = vmatpush1.msra.mxu0 0.0
    %382 = vmatprep.mubr.f32.mxu0 0.0
    %v383 = vand.u32 %v53, 4294901760
    %v384 = vsub.f32 %v53, %v383
    %v385 = vand.u32 %v384, 4294901760
    %386 = vmatmul.mubr.f32.gmra.mrb[0].mxu0 %v385
    %v387 = vpop.f32.mrb[0].mxu0
    %v388 = vadd.f32 %v310, %v387
    %v389 = vpop.f32.mrb[0].mxu0
    %390 = vdwg.mxu0
    %391 = vmatprep.subr.mxu0 0.0
    %v392 = vand.u32 %v46, 4294901760
    %v393 = vsub.f32 %v46, %v392
    %v394 = vand.u32 %v393, 4294901760
    %395 = vmatpush1.msra.mxu0 %v394
    %396 = vmatprep.subr.mxu0 0.0
    %v397 = vand.u32 %v47, 4294901760
    %v398 = vsub.f32 %v47, %v397
    %v399 = vand.u32 %v398, 4294901760
    %400 = vmatpush1.msra.mxu0 %v399
    %401 = vmatprep.subr.mxu0 0.0
    %v402 = vand.u32 %v48, 4294901760
    %v403 = vsub.f32 %v48, %v402
    %v404 = vand.u32 %v403, 4294901760
    %405 = vmatpush1.msra.mxu0 %v404
    %406 = vmatprep.subr.mxu0 0.0
    %v407 = vand.u32 %v49, 4294901760
    %v408 = vsub.f32 %v49, %v407
    %v409 = vand.u32 %v408, 4294901760
    %410 = vmatpush1.msra.mxu0 %v409
    %411 = vmatprep.subr.mxu0 0.0
    %v412 = vand.u32 %v50, 4294901760
    %v413 = vsub.f32 %v50, %v412
    %v414 = vand.u32 %v413, 4294901760
    %415 = vmatpush1.msra.mxu0 %v414
    %416 = vmatprep.subr.mxu0 0.0
    %417 = vmatpush1.msra.mxu0 0.0
    %418 = vmatprep.subr.mxu0 0.0
    %419 = vmatpush1.msra.mxu0 0.0
    %420 = vmatprep.subr.mxu0 0.0
    %421 = vmatpush1.msra.mxu0 0.0
    %422 = vmatprep.subr.mxu0 0.0
    %423 = vmatpush1.msra.mxu0 0.0
    %424 = vmatprep.subr.mxu0 0.0
    %425 = vmatpush1.msra.mxu0 0.0
    %426 = vmatprep.subr.mxu0 0.0
    %427 = vmatpush1.msra.mxu0 0.0
    %428 = vmatprep.subr.mxu0 0.0
    %429 = vmatpush1.msra.mxu0 0.0
    %430 = vmatprep.subr.mxu0 0.0
    %431 = vmatpush1.msra.mxu0 0.0
    %432 = vmatprep.subr.mxu0 0.0
    %433 = vmatpush1.msra.mxu0 0.0
    %434 = vmatprep.subr.mxu0 0.0
    %435 = vmatpush1.msra.mxu0 0.0
    %436 = vmatprep.subr.mxu0 0.0
    %437 = vmatpush1.msra.mxu0 0.0
    %438 = vmatprep.subr.mxu0 0.0
    %439 = vmatpush1.msra.mxu0 0.0
    %440 = vmatprep.subr.mxu0 0.0
    %441 = vmatpush1.msra.mxu0 0.0
    %442 = vmatprep.subr.mxu0 0.0
    %443 = vmatpush1.msra.mxu0 0.0
    %444 = vmatprep.subr.mxu0 0.0
    %445 = vmatpush1.msra.mxu0 0.0
    %446 = vmatprep.subr.mxu0 0.0
    %447 = vmatpush1.msra.mxu0 0.0
    %448 = vmatprep.subr.mxu0 0.0
    %449 = vmatpush1.msra.mxu0 0.0
    %450 = vmatprep.subr.mxu0 0.0
    %451 = vmatpush1.msra.mxu0 0.0
    %452 = vmatprep.subr.mxu0 0.0
    %453 = vmatpush1.msra.mxu0 0.0
    %454 = vmatprep.subr.mxu0 0.0
    %455 = vmatpush1.msra.mxu0 0.0
    %456 = vmatprep.subr.mxu0 0.0
    %457 = vmatpush1.msra.mxu0 0.0
    %458 = vmatprep.subr.mxu0 0.0
    %459 = vmatpush1.msra.mxu0 0.0
    %460 = vmatprep.subr.mxu0 0.0
    %461 = vmatpush1.msra.mxu0 0.0
    %462 = vmatprep.subr.mxu0 0.0
    %463 = vmatpush1.msra.mxu0 0.0
    %464 = vmatprep.subr.mxu0 0.0
    %465 = vmatpush1.msra.mxu0 0.0
    %466 = vmatprep.subr.mxu0 0.0
    %467 = vmatpush1.msra.mxu0 0.0
    %468 = vmatprep.subr.mxu0 0.0
    %469 = vmatpush1.msra.mxu0 0.0
    %470 = vmatprep.mubr.f32.mxu0 0.0
    %v471 = vand.u32 %v53, 4294901760
    %472 = vmatmul.mubr.f32.gmra.mrb[0].mxu0 %v471
    %v473 = vpop.f32.mrb[0].mxu0
    %v474 = vadd.f32 %v388, %v473
    %v475 = vpop.f32.mrb[0].mxu0
    %476 = vdwg.mxu0
    %477 = vmatprep.subr.mxu0 0.0
    %v478 = vand.u32 %v46, 4294901760
    %479 = vmatpush1.msra.mxu0 %v478
    %480 = vmatprep.subr.mxu0 0.0
    %v481 = vand.u32 %v47, 4294901760
    %482 = vmatpush1.msra.mxu0 %v481
    %483 = vmatprep.subr.mxu0 0.0
    %v484 = vand.u32 %v48, 4294901760
    %485 = vmatpush1.msra.mxu0 %v484
    %486 = vmatprep.subr.mxu0 0.0
    %v487 = vand.u32 %v49, 4294901760
    %488 = vmatpush1.msra.mxu0 %v487
    %489 = vmatprep.subr.mxu0 0.0
    %v490 = vand.u32 %v50, 4294901760
    %491 = vmatpush1.msra.mxu0 %v490
    %492 = vmatprep.subr.mxu0 0.0
    %493 = vmatpush1.msra.mxu0 0.0
    %494 = vmatprep.subr.mxu0 0.0
    %495 = vmatpush1.msra.mxu0 0.0
    %496 = vmatprep.subr.mxu0 0.0
    %497 = vmatpush1.msra.mxu0 0.0
    %498 = vmatprep.subr.mxu0 0.0
    %499 = vmatpush1.msra.mxu0 0.0
    %500 = vmatprep.subr.mxu0 0.0
    %501 = vmatpush1.msra.mxu0 0.0
    %502 = vmatprep.subr.mxu0 0.0
    %503 = vmatpush1.msra.mxu0 0.0
    %504 = vmatprep.subr.mxu0 0.0
    %505 = vmatpush1.msra.mxu0 0.0
    %506 = vmatprep.subr.mxu0 0.0
    %507 = vmatpush1.msra.mxu0 0.0
    %508 = vmatprep.subr.mxu0 0.0
    %509 = vmatpush1.msra.mxu0 0.0
    %510 = vmatprep.subr.mxu0 0.0
    %511 = vmatpush1.msra.mxu0 0.0
    %512 = vmatprep.subr.mxu0 0.0
    %513 = vmatpush1.msra.mxu0 0.0
    %514 = vmatprep.subr.mxu0 0.0
    %515 = vmatpush1.msra.mxu0 0.0
    %516 = vmatprep.subr.mxu0 0.0
    %517 = vmatpush1.msra.mxu0 0.0
    %518 = vmatprep.subr.mxu0 0.0
    %519 = vmatpush1.msra.mxu0 0.0
    %520 = vmatprep.subr.mxu0 0.0
    %521 = vmatpush1.msra.mxu0 0.0
    %522 = vmatprep.subr.mxu0 0.0
    %523 = vmatpush1.msra.mxu0 0.0
    %524 = vmatprep.subr.mxu0 0.0
    %525 = vmatpush1.msra.mxu0 0.0
    %526 = vmatprep.subr.mxu0 0.0
    %527 = vmatpush1.msra.mxu0 0.0
    %528 = vmatprep.subr.mxu0 0.0
    %529 = vmatpush1.msra.mxu0 0.0
    %530 = vmatprep.subr.mxu0 0.0
    %531 = vmatpush1.msra.mxu0 0.0
    %532 = vmatprep.subr.mxu0 0.0
    %533 = vmatpush1.msra.mxu0 0.0
    %534 = vmatprep.subr.mxu0 0.0
    %535 = vmatpush1.msra.mxu0 0.0
    %536 = vmatprep.subr.mxu0 0.0
    %537 = vmatpush1.msra.mxu0 0.0
    %538 = vmatprep.subr.mxu0 0.0
    %539 = vmatpush1.msra.mxu0 0.0
    %540 = vmatprep.subr.mxu0 0.0
    %541 = vmatpush1.msra.mxu0 0.0
    %542 = vmatprep.subr.mxu0 0.0
    %543 = vmatpush1.msra.mxu0 0.0
    %544 = vmatprep.subr.mxu0 0.0
    %545 = vmatpush1.msra.mxu0 0.0
    %546 = vmatprep.mubr.f32.mxu0 0.0
    %v547 = vand.u32 %v53, 4294901760
    %548 = vmatmul.mubr.f32.gmra.mrb[0].mxu0 %v547
    %v549 = vpop.f32.mrb[0].mxu0
    %v550 = vadd.f32 %v474, %v549
    %v551 = vpop.f32.mrb[0].mxu0
    %552 = vdwg.mxu0
    %vm553 = vcmask 162816
    %554 = vst.msk [vmem:[#allocation2] sm:$0xff] %vm553, %v550
    // Predicated region
    $region10: #{tpu_custom_call.1} parent=1 // pred_check
      _
    $region11: #{tpu_custom_call.1} parent=1 // pred_check_branch
      %556 = sbr.rel (0) target = $region13
    $region12: #{tpu_custom_call.1} parent=1 // pred_region
      %s558 = ssub.s32 128, 128
      %559 = vsyncadd [#allocation3], %s558
      %s561 = sshll.u32 [#allocation2], 4
      %s562 = int_to_ptr.vmem [resolvable:$true] %s561
      %564 = dma.vmem_to_hbm [thread:$0]  %s562, 128, %s2, [#allocation3]
    $region13: #{tpu_custom_call.1} parent=1 // pred_fallthru
      _
    // Predicated region
    $region14: #{tpu_custom_call.1} parent=1 // pred_check
      _
    $region15: #{tpu_custom_call.1} parent=1 // pred_check_branch
      %566 = sbr.rel (0) target = $region17
    $region16: #{tpu_custom_call.1} parent=1 // pred_region
      %567 = dma.done [#allocation3], 128
    $region17: #{tpu_custom_call.1} parent=1 // pred_fallthru
      _
    %568 = vsyncpa [#allocation3], 1

</llo_original>
